<compile_context>
chip_gen: v7x
topology: tpu7x:2x2x1
jax: 0.10.0
libtpu: 0.0.40
codegen_flags: <defaults>
</compile_context>

<pallas_src>
import functools

import jax
import jax.numpy as jnp
from jax.experimental import pallas as pl
from jax.experimental.pallas import tpu as pltpu


def _round_up(x, m):
    return ((x + m - 1) // m) * m


def _pooling_kernel(seq_ref, len_ref, out_ref, *scratch, pooling_type,
                    max_seq_length, tt, rows_last, nt_static):
    """Grid: (batch blocks [parallel], sequence blocks [arbitrary/reduction]).

    seq_ref : VMEM block [tb, tt, D]
    len_ref : VMEM block [tb, 1] (int32), resident across the T axis
    out_ref : VMEM block [tb, D], resident across the T axis
    scratch : optional f32 accumulator [tb, D] (only for non-f32 outputs)
    """
    acc_ref = scratch[0] if scratch else out_ref
    t = pl.program_id(1)

    tile = seq_ref[...].astype(jnp.float32)           # [tb, tt, D]
    if rows_last != tt:
        # Partial last sequence tile: zero out rows >= valid length of the
        # tile (covers both the max_seq_length cut and any OOB padding).
        row = jax.lax.broadcasted_iota(jnp.int32, tile.shape, 1)
        limit = jnp.where(t == nt_static - 1, rows_last, tt)
        tile = jnp.where(row < limit, tile, 0.0)
    partial = jnp.sum(tile, axis=1)                   # [tb, D] f32

    if nt_static == 1:
        acc_ref[...] = partial.astype(acc_ref.dtype)
    else:
        @pl.when(t == 0)
        def _():
            acc_ref[...] = jnp.zeros_like(acc_ref)

        acc_ref[...] += partial.astype(acc_ref.dtype)

    def _finalize():
        feat = acc_ref[...].astype(jnp.float32)
        if pooling_type == "mean":
            lengths = len_ref[...].astype(jnp.float32)  # [tb, 1]
            if max_seq_length > 0:
                lengths = jnp.minimum(lengths, jnp.float32(max_seq_length))
            lengths = jnp.maximum(lengths, jnp.float32(1.0))
            feat = feat * pl.reciprocal(lengths, approx=False)
        out_ref[...] = feat.astype(out_ref.dtype)

    # With f32 output + sum pooling the accumulator already *is* the output.
    need_finalize = (pooling_type == "mean") or bool(scratch)
    if need_finalize:
        if nt_static == 1:
            _finalize()
        else:
            pl.when(t == nt_static - 1)(_finalize)


def _choose_batch_tile(B):
    """Batch tile: multiple of 8 that divides B (>=2 blocks when possible
    so v7x's two TensorCores both get work), else the full batch."""
    if B % 8 == 0 and B >= 16:
        tb = min(B // 2, 128)
        tb -= tb % 8
        while tb > 8 and B % tb != 0:
            tb -= 8
        if tb >= 8 and B % tb == 0:
            return tb
    return B


def pooling_encoder(sequence, sequence_length, *, pooling_type="mean",
                    max_seq_length=0):
    """JAX wrapper mirroring PoolingEncoder.forward."""
    assert pooling_type in ("sum", "mean")
    B, T, D = sequence.shape
    out_dtype = sequence.dtype
    dtype_bytes = jnp.dtype(sequence.dtype).itemsize

    # Effective sequence length (truncation handled inside the kernel grid,
    # no HBM copy).
    t_eff = min(T, max_seq_length) if max_seq_length > 0 else T

    tb = _choose_batch_tile(B)
    num_b_blocks = B // tb

    # Sequence tile: largest multiple of the packing granularity that keeps
    # the double-buffered sequence DMA under ~8 MiB (fits the 16 MiB scoped
    # VMEM default on v5e; comfortably under v6e/v7x defaults as well).
    sub = 16 if dtype_bytes == 2 else 8
    seq_budget_bytes = 8 * 1024 * 1024
    tt_cap = max(sub, (seq_budget_bytes // (2 * tb * D * dtype_bytes)) // sub * sub)
    if t_eff == T:
        tt = T if T <= tt_cap else tt_cap          # full extent or sub-multiple
    else:
        tt = min(_round_up(t_eff, sub), tt_cap)    # sub-multiple, may exceed t_eff
    num_t_blocks = pl.cdiv(t_eff, tt)
    rows_last = t_eff - (num_t_blocks - 1) * tt    # valid rows in last tile

    lengths_2d = sequence_length.astype(jnp.int32).reshape(B, 1)

    use_scratch = jnp.dtype(out_dtype) != jnp.dtype(jnp.float32)
    scratch_shapes = [pltpu.VMEM((tb, D), jnp.float32)] if use_scratch else []

    kernel = functools.partial(
        _pooling_kernel,
        pooling_type=pooling_type,
        max_seq_length=max_seq_length,
        tt=tt,
        rows_last=rows_last,
        nt_static=num_t_blocks,
    )

    return pl.pallas_call(
        kernel,
        out_shape=jax.ShapeDtypeStruct((B, D), out_dtype),
        grid_spec=pltpu.PrefetchScalarGridSpec(
            num_scalar_prefetch=0,
            grid=(num_b_blocks, num_t_blocks),
            in_specs=[
                # sequence tile: walk batch and sequence axes.
                pl.BlockSpec((tb, tt, D), lambda b, t: (b, t, 0)),
                # lengths: resident across the reduction axis.
                pl.BlockSpec((tb, 1), lambda b, t: (b, 0)),
            ],
            out_specs=pl.BlockSpec((tb, D), lambda b, t: (b, 0)),
            scratch_shapes=scratch_shapes,
        ),
        compiler_params=pltpu.CompilerParams(
            dimension_semantics=("parallel", "arbitrary"),
        ),
    )(sequence, lengths_2d)


def _reference(sequence, sequence_length, *, pooling_type, max_seq_length):
    if max_seq_length > 0:
        sequence = sequence[:, :max_seq_length, :]
    feature = jnp.sum(sequence.astype(jnp.float32), axis=1)
    if pooling_type == "mean":
        lengths = sequence_length
        if max_seq_length > 0:
            lengths = jnp.minimum(lengths, max_seq_length)
        lengths = jnp.maximum(lengths, 1)
        feature = feature / lengths[:, None].astype(feature.dtype)
    return feature.astype(sequence.dtype)


if __name__ == "__main__":
    key = jax.random.PRNGKey(0)
    k_seq, k_len = jax.random.split(key)

    # Case 1: mean pooling, f32, truncated sequence (matches module defaults).
    B, T, D = 2, 24, 32
    max_seq_length = 16
    sequence = jax.random.normal(k_seq, (B, T, D), dtype=jnp.float32)
    sequence_length = jax.random.randint(k_len, (B,), minval=0, maxval=T + 1,
                                         dtype=jnp.int32)

    out = pooling_encoder(sequence, sequence_length,
                          pooling_type="mean", max_seq_length=max_seq_length)
    out = jax.block_until_ready(out)
    ref = _reference(sequence, sequence_length,
                     pooling_type="mean", max_seq_length=max_seq_length)
    assert out.shape == (B, D), out.shape
    assert jnp.allclose(out, ref, atol=1e-5, rtol=1e-5), (out, ref)

    # Case 2: odd truncation (exercises partial-tile masking), sum pooling.
    out2 = pooling_encoder(sequence, sequence_length,
                           pooling_type="sum", max_seq_length=13)
    out2 = jax.block_until_ready(out2)
    ref2 = _reference(sequence, sequence_length,
                      pooling_type="sum", max_seq_length=13)
    assert jnp.allclose(out2, ref2, atol=1e-5, rtol=1e-5), (out2, ref2)

    # Case 3: bf16 input/output (f32 scratch accumulator path), no truncation.
    seq_bf16 = sequence.astype(jnp.bfloat16)
    out3 = pooling_encoder(seq_bf16, sequence_length,
                           pooling_type="mean", max_seq_length=0)
    out3 = jax.block_until_ready(out3)
    ref3 = _reference(seq_bf16, sequence_length,
                      pooling_type="mean", max_seq_length=0)
    assert jnp.allclose(out3.astype(jnp.float32), ref3.astype(jnp.float32),
                        atol=2e-2, rtol=2e-2), (out3, ref3)

    print("KERNEL_OK")
</pallas_src>

<mosaic_0001>
module attributes {stable_mosaic.version = 11 : i64} {
  func.func @_pooling_kernel(%arg0: i32, %arg1: i32, %arg2: memref<2x16x32xf32, #tpu.memory_space<vmem>>, %arg3: memref<2x1xi32, #tpu.memory_space<vmem>>, %arg4: memref<2x32xf32, #tpu.memory_space<vmem>>) attributes {dimension_semantics = [#tpu.dimension_semantics<parallel>, #tpu.dimension_semantics<arbitrary>], iteration_bounds = array<i64: 1, 1>, scalar_prefetch = 0 : i64, scratch_operands = 0 : i64, tpu.core_type = #tpu.core_type<tc>, window_params = [{transform_indices = @transform_0, window_bounds = array<i64: 2, 16, 32>}, {transform_indices = @transform_1, window_bounds = array<i64: 2, 1>}, {transform_indices = @transform_2, window_bounds = array<i64: 2, 32>}]} {
    %c0 = arith.constant 0 : index
    %c0_0 = arith.constant 0 : index
    %c0_1 = arith.constant 0 : index
    %0 = vector.load %arg2[%c0, %c0_0, %c0_1] : memref<2x16x32xf32, #tpu.memory_space<vmem>>, vector<2x16x32xf32>
    %cst = arith.constant dense<0.000000e+00> : vector<2x32xf32>
    %1 = vector.multi_reduction <add>, %0, %cst [1] : vector<2x16x32xf32> to vector<2x32xf32>
    %c0_2 = arith.constant 0 : index
    %c0_3 = arith.constant 0 : index
    %2 = vector.load %arg4[%c0_2, %c0_3] : memref<2x32xf32, #tpu.memory_space<vmem>>, vector<2x32xf32>
    tpu.vector_store %arg4[%c0_2, %c0_3], %1 {strides = array<i32>} : memref<2x32xf32, #tpu.memory_space<vmem>>, vector<2x32xf32>,
    %c0_4 = arith.constant 0 : index
    %c0_5 = arith.constant 0 : index
    %3 = vector.load %arg4[%c0_4, %c0_5] : memref<2x32xf32, #tpu.memory_space<vmem>>, vector<2x32xf32>
    %c0_6 = arith.constant 0 : index
    %c0_7 = arith.constant 0 : index
    %4 = vector.load %arg3[%c0_6, %c0_7] : memref<2x1xi32, #tpu.memory_space<vmem>>, vector<2x1xi32>
    %5 = arith.sitofp %4 : vector<2x1xi32> to vector<2x1xf32>
    %cst_8 = arith.constant 1.600000e+01 : f32
    %6 = vector.broadcast %cst_8 : f32 to vector<2x1xf32>
    %7 = arith.minimumf %5, %6 : vector<2x1xf32>
    %cst_9 = arith.constant 1.000000e+00 : f32
    %8 = vector.broadcast %cst_9 : f32 to vector<2x1xf32>
    %9 = arith.maximumf %7, %8 : vector<2x1xf32>
    %10 = tpu.reciprocal %9 : vector<2x1xf32> -> vector<2x1xf32>
    %11 = vector.broadcast %10 : vector<2x1xf32> to vector<2x32xf32>
    %12 = arith.mulf %3, %11 : vector<2x32xf32>
    %c0_10 = arith.constant 0 : index
    %c0_11 = arith.constant 0 : index
    %13 = vector.load %arg4[%c0_10, %c0_11] : memref<2x32xf32, #tpu.memory_space<vmem>>, vector<2x32xf32>
    tpu.vector_store %arg4[%c0_10, %c0_11], %12 {strides = array<i32>} : memref<2x32xf32, #tpu.memory_space<vmem>>, vector<2x32xf32>,
    return
  }
  func.func @transform_0(%arg0: i32, %arg1: i32) -> (i32, i32, i32) {
    %c0_i32 = arith.constant 0 : i32
    %c0_i32_0 = arith.constant 0 : i32
    return %arg0, %arg1, %c0_i32 : i32, i32, i32
  }
  func.func @transform_1(%arg0: i32, %arg1: i32) -> (i32, i32) {
    %c0_i32 = arith.constant 0 : i32
    %c0_i32_0 = arith.constant 0 : i32
    return %arg0, %c0_i32 : i32, i32
  }
  func.func @transform_2(%arg0: i32, %arg1: i32) -> (i32, i32) {
    %c0_i32 = arith.constant 0 : i32
    %c0_i32_0 = arith.constant 0 : i32
    return %arg0, %c0_i32 : i32, i32
  }
}

</mosaic_0001>

<llo_original>
// kernel: tpu_custom_call.1
$region0: #{tpu_custom_call.1}
  #allocation0 [shape = 'u32[]', space=smem, size = 0x4, offset = 0x4, fixed_abs, tag = 'smem constant byte address 0x4 - core index']
  #allocation1 [shape = 'u32[144,128]{1,0:T(1,128)}', space=vmem, size = 0x12000, scoped, tag = 'internal scratch']
  #allocation6 [shape = 's32[]', space=sflag, size = 0x4, offset = 0, fixed_abs, tag = 'sflag constant byte address 0x0 - dummy sync flag']
  %s0 = inlined_call_operand.hbm [shape: f32[2,24,32], index: 0, kind: input, shape index: {}]
  %s1 = inlined_call_operand.vmem [shape: s32[2,1], index: 1, kind: input, shape index: {}]
  %s2 = inlined_call_operand.hbm [shape: f32[2,32], index: 2, kind: output, shape index: {}]
  %s3 = sld [smem:[#allocation0]]
  $region22: #{tpu_custom_call.1} parent=0
    _
  %s5 = ssub.s32 1, %s3
  %s6 = scalar_select 0, %s5, %s3
  $region1: #{tpu_custom_call.1} parent=0
    #allocation2 [shape = 'u8[16384]{0}', space=vmem, size = 0x4000, scoped, tag = 'input window, operand 0, single buffered']
    #allocation3 [shape = 's32[1]{0}', space=sflag, size = 0x4, scoped, tag = 'scoped memory for tpu_custom_call.1']
    #allocation4 [shape = 's32[1]{0}', space=sflag, size = 0x4, scoped, tag = 'scoped memory for tpu_custom_call.1']
    #allocation5 [shape = 'u8[1024]{0}', space=vmem, size = 0x400, scoped, tag = 'output window, operand 0, single buffered']
    %7 = vsyncpa [#allocation3], 0
    %8 = vsyncpa [#allocation4], 0
    // Predicated region
    $region2: #{tpu_custom_call.1} parent=1 // pred_check
      _
    $region3: #{tpu_custom_call.1} parent=1 // pred_check_branch
      %10 = sbr.rel (0) target = $region5
    $region4: #{tpu_custom_call.1} parent=1 // pred_region
      #allocation7 [shape = 'u32[6]{0}', space=smem, size = 0x18, scoped, tag = 'DMA stride descriptor']
      %s12 = ssub.s32 512, 512
      %13 = vsyncadd [#allocation3], %s12
      %s15 = sshll.u32 1, 14
      %s16 = sxor.u32 4294967295, %s15
      %s18 = sld [smem:[#allocation0]]
      %s19 = sadd.s32 2, %s18
      %s21 = sshll.u32 7, 26
      %s22 = sxor.u32 4294967295, %s21
      %s23 = sand.u32 0, %s22
      %s24 = sshll.u32 %s19, 26
      %s25 = sor.u32 %s23, %s24
      %s26 = sshll.u32 [#allocation2], 4
      %s27 = int_to_ptr.vmem [resolvable:$true] %s26
      %33 = sst [smem:[#allocation7]] 384
      %s34 = scalar_lea.smem [#allocation7], 1
      %35 = sst [smem:[%s34]] 256
      %s36 = scalar_lea.smem [#allocation7], 2
      %37 = sst [smem:[%s36]] 2
      %s38 = scalar_lea.smem [#allocation7], 3
      %39 = sst [smem:[%s38]] 128
      %s40 = scalar_lea.smem [#allocation7], 4
      %41 = sst [smem:[%s40]] 128
      %s42 = scalar_lea.smem [#allocation7], 5
      %43 = sst [smem:[%s42]] 8
      %45 = dma.general %s0, 512, %s27, [#allocation3], [#allocation6], [#allocation7], %s25, 0
    $region5: #{tpu_custom_call.1} parent=1 // pred_fallthru
      _
    // Predicated region
    $region6: #{tpu_custom_call.1} parent=1 // pred_check
      _
    $region7: #{tpu_custom_call.1} parent=1 // pred_check_branch
      %47 = sbr.rel (0) target = $region9
    $region8: #{tpu_custom_call.1} parent=1 // pred_region
      _
    $region9: #{tpu_custom_call.1} parent=1 // pred_fallthru
      _
    // Predicated region
    $region10: #{tpu_custom_call.1} parent=1 // pred_check
      _
    $region11: #{tpu_custom_call.1} parent=1 // pred_check_branch
      %49 = sbr.rel (0) target = $region13
    $region12: #{tpu_custom_call.1} parent=1 // pred_region
      %50 = dma.done [#allocation3], 512
    $region13: #{tpu_custom_call.1} parent=1 // pred_fallthru
      _
    %v51 = vld [vmem:[#allocation2] sm:$0xff]
    %v52 = vld [vmem:[#allocation2 + $0x8] sm:$0xff]
    %v53 = vld [vmem:[#allocation2 + $0x10] sm:$0xff]
    %v54 = vld [vmem:[#allocation2 + $0x18] sm:$0xff]
    %vm55 = vcmask 261120
    %v56 = vsel %vm55, %v51, 0.0
    %v57 = vsel %vm55, %v52, 0.0
    %v58 = vadd.f32 %v56, %v57
    %v59 = vrot.slane %v58, 4
    %v60 = vadd.f32 %v58, %v59
    %v61 = vrot.slane %v60, 2
    %v62 = vadd.f32 %v60, %v61
    %v63 = vrot.slane %v62, 1
    %v64 = vadd.f32 %v62, %v63
    %v65 = vsel %vm55, %v53, 0.0
    %v66 = vsel %vm55, %v54, 0.0
    %v67 = vadd.f32 %v65, %v66
    %v68 = vrot.slane %v67, 4
    %v69 = vadd.f32 %v67, %v68
    %v70 = vrot.slane %v69, 2
    %v71 = vadd.f32 %v69, %v70
    %v72 = vrot.slane %v71, 1
    %v73 = vadd.f32 %v71, %v72
    %vm76 = vcmask 1041409
    %v77 = vsel %vm76, %v73, %v64
    %vm79 = vcmask 254976
    %80 = vst.msk [vmem:[#allocation5] sm:$0x3] %vm79, %v77
    %v81 = vld [vmem:[#allocation5] sm:$0x3]
    %v82 = vld [vmem:[%s1] sm:$0x3]
    %v83 = vcvt.s32.f32 %v82
    %v84 = vmin.f32 %v83, 16.0
    %v85 = vmax.f32 %v84, 1.0
    %v86 = vrcp.pop %v85
    %88 = vset.pattern.permute.xlu0 0
    %89 = vperm.xlu0 %88, %v86
    %v90 = vpop.permute.xlu0 %89
    %v92 = vmul.f32 %v81, %v90
    %93 = vst.msk [vmem:[#allocation5] sm:$0x3] %vm79, %v92
    // Predicated region
    $region14: #{tpu_custom_call.1} parent=1 // pred_check
      _
    $region15: #{tpu_custom_call.1} parent=1 // pred_check_branch
      %95 = sbr.rel (0) target = $region17
    $region16: #{tpu_custom_call.1} parent=1 // pred_region
      %s97 = ssub.s32 32, 32
      %98 = vsyncadd [#allocation4], %s97
      %s100 = sshll.u32 [#allocation5], 4
      %s101 = int_to_ptr.vmem [resolvable:$true] %s100
      %103 = dma.vmem_to_hbm [thread:$0]  %s101, 32, %s2, [#allocation4]
    $region17: #{tpu_custom_call.1} parent=1 // pred_fallthru
      _
    // Predicated region
    $region18: #{tpu_custom_call.1} parent=1 // pred_check
      _
    $region19: #{tpu_custom_call.1} parent=1 // pred_check_branch
      %105 = sbr.rel (0) target = $region21
    $region20: #{tpu_custom_call.1} parent=1 // pred_region
      %106 = dma.done [#allocation4], 32
    $region21: #{tpu_custom_call.1} parent=1 // pred_fallthru
      _
    %107 = vsyncpa [#allocation3], 1
    %108 = vsyncpa [#allocation4], 1

</llo_original>
